<compile_context>
chip_gen: v5e
topology: v5e:2x2
jax: 0.10.0
libtpu: 0.0.40
codegen_flags: <defaults>
</compile_context>

<pallas_src>
import functools
from typing import NamedTuple

import jax
import jax.numpy as jnp
from jax.experimental import pallas as pl
from jax.experimental.pallas import tpu as pltpu


def _round_up(x, m):
    return ((x + m - 1) // m) * m


# --------------------------------------------------------------------------- #
# Parameter preparation (done once, outside the per-call path)
# --------------------------------------------------------------------------- #
class IELMParams(NamedTuple):
    w1: jax.Array      # (D, S_pad)      bf16  padded weight_IH
    b1: jax.Array      # (1, S_pad)      f32   padded bias_IH
    w2: jax.Array      # (S_pad, O_pad)  bf16  padded weight_HO
    out_dim: int       # logical output dim O


def prepare_ielm_params(weight_IH, bias_IH, weight_HO):
    """Pad / cast the IELM parameters once; reuse for every forward(size)."""
    d, hidden = weight_IH.shape
    o = weight_HO.shape[1]
    s_pad = _round_up(max(hidden, 1), 128)
    o_pad = _round_up(max(o, 1), 128)
    w1 = jnp.zeros((d, s_pad), jnp.bfloat16).at[:, :hidden].set(
        jnp.asarray(weight_IH, jnp.bfloat16))
    b1 = jnp.zeros((1, s_pad), jnp.float32).at[:, :bias_IH.shape[1]].set(
        jnp.asarray(bias_IH, jnp.float32))
    w2 = jnp.zeros((s_pad, o_pad), jnp.bfloat16).at[:weight_HO.shape[0], :o].set(
        jnp.asarray(weight_HO, jnp.bfloat16))
    return IELMParams(w1=w1, b1=b1, w2=w2, out_dim=o)


# --------------------------------------------------------------------------- #
# Kernel
# --------------------------------------------------------------------------- #
def _ielm_kernel(size_ref, x_ref, w1_ref, b1_ref, w2_ref, out_ref):
    # size_ref: (1,) int32 in SMEM (scalar prefetch) — number of active hidden units
    # x_ref   : (TM, D)        f32  streamed input-row tile
    # w1_ref  : (D, S_pad)     bf16 padded weight_IH (resident)
    # b1_ref  : (1, S_pad)     f32  padded bias_IH   (resident)
    # w2_ref  : (S_pad, O_pad) bf16 padded weight_HO (resident)
    # out_ref : (TM, O_pad)    f32
    x = x_ref[...].astype(jnp.bfloat16)                    # cast in-kernel (VPU, hidden under MXU)
    h = jnp.dot(x, w1_ref[...], preferred_element_type=jnp.float32)
    h = h + b1_ref[...]                                    # f32 bias add
    h = 0.5 * jnp.tanh(0.5 * h) + 0.5                      # sigmoid via tanh -> EUP slot
    # Mask hidden units >= size so they contribute nothing to the 2nd matmul.
    col = jax.lax.broadcasted_iota(jnp.int32, h.shape, 1)
    h = jnp.where(col < size_ref[0], h, 0.0)
    pred = jnp.dot(h.astype(jnp.bfloat16), w2_ref[...],
                   preferred_element_type=jnp.float32)
    out_ref[...] = pred.astype(out_ref.dtype)


# --------------------------------------------------------------------------- #
# Wrapper
# --------------------------------------------------------------------------- #
def _vmem_usable_bytes():
    # Generation-aware VMEM budget (v5e/v6e: 128 MiB, v7x: 64 MiB per core).
    try:
        cap = int(pltpu.get_tpu_info().vmem_capacity_bytes)
    except Exception:
        cap = 64 * 1024 * 1024
    return max(32 * 1024 * 1024, int(cap * 0.8))


def _pick_tm(n, d, s_pad, o_pad, vmem_usable, tm_cap=512):
    # Big row tiles: the grid is a sequential loop on a single TensorCore, so
    # extra steps only add fixed overhead.  Floor at 16 rows (bf16 sublane pack).
    tm = max(16, min(tm_cap, _round_up(n, 16)))
    # Worst case: double-buffered resident params + double-buffered streamed tiles.
    resident = 2 * (d * s_pad * 2 + 8 * s_pad * 4 + s_pad * o_pad * 2)
    while tm > 16:
        stream = 2 * (tm * d * 4 + tm * o_pad * 4)
        if resident + stream <= vmem_usable:
            break
        tm = max(16, (tm // 2 // 16) * 16)
    return tm


@functools.lru_cache(maxsize=None)
def _get_forward_fn(n, d, s_pad, o_pad, o, tm, vmem_usable, single_buffer_params):
    grid = (pl.cdiv(n, tm),)

    param_bufs = 1 if single_buffer_params else 2
    resident = param_bufs * (d * s_pad * 2 + 8 * s_pad * 4 + s_pad * o_pad * 2)
    stream = 2 * (tm * d * 4 + tm * o_pad * 4)
    vmem_limit = int(min(vmem_usable, max(32 << 20, 2 * (resident + stream))))

    pkw = dict(pipeline_mode=pl.Buffered(1)) if single_buffer_params else {}

    call = pl.pallas_call(
        _ielm_kernel,
        out_shape=jax.ShapeDtypeStruct((n, o_pad), jnp.float32),
        grid_spec=pltpu.PrefetchScalarGridSpec(
            num_scalar_prefetch=1,
            grid=grid,
            in_specs=[
                pl.BlockSpec((tm, d), lambda i, size_ref: (i, 0)),            # streamed rows
                pl.BlockSpec((d, s_pad), lambda i, size_ref: (0, 0), **pkw),  # resident w1
                pl.BlockSpec((1, s_pad), lambda i, size_ref: (0, 0), **pkw),  # resident b1
                pl.BlockSpec((s_pad, o_pad), lambda i, size_ref: (0, 0), **pkw),  # resident w2
            ],
            out_specs=pl.BlockSpec((tm, o_pad), lambda i, size_ref: (i, 0)),
        ),
        compiler_params=pltpu.CompilerParams(
            dimension_semantics=("parallel",),
            vmem_limit_bytes=vmem_limit,
        ),
    )

    def fwd(size_arr, x, w1, b1, w2):
        out = call(size_arr, x, w1, b1, w2)
        return out[:, :o]

    return jax.jit(fwd)


_SINGLE_BUFFER_PARAMS_OK = True  # flipped to False if pl.Buffered(1) is rejected


def ielm_forward_prepared(x, params: IELMParams, size, *, tm_cap=512):
    """IELM.forward(input, size) using pre-padded parameters (preferred path)."""
    global _SINGLE_BUFFER_PARAMS_OK
    n, d = x.shape
    s_pad = params.w1.shape[1]
    o_pad = params.w2.shape[1]
    o = params.out_dim

    vmem_usable = _vmem_usable_bytes()
    tm = _pick_tm(n, d, s_pad, o_pad, vmem_usable, tm_cap)

    x = jnp.asarray(x, jnp.float32)
    size_arr = jnp.asarray(size, jnp.int32).reshape((1,))

    attempts = (True, False) if _SINGLE_BUFFER_PARAMS_OK else (False,)
    last_err = None
    for single_buf in attempts:
        try:
            fwd = _get_forward_fn(n, d, s_pad, o_pad, o, tm, vmem_usable, single_buf)
            return fwd(size_arr, x, params.w1, params.b1, params.w2)
        except Exception as e:  # pl.Buffered(1) unsupported -> default buffering
            last_err = e
            if single_buf:
                _SINGLE_BUFFER_PARAMS_OK = False
                continue
            raise
    raise last_err


def ielm_forward(x, weight_IH, bias_IH, weight_HO, size, *, tm_cap=512):
    """Convenience wrapper matching the previous signature.  In a loop over
    sizes, prefer prepare_ielm_params() once + ielm_forward_prepared()."""
    return ielm_forward_prepared(
        x, prepare_ielm_params(weight_IH, bias_IH, weight_HO), size, tm_cap=tm_cap)


# --------------------------------------------------------------------------- #
# Demo / correctness check
# --------------------------------------------------------------------------- #
if __name__ == "__main__":
    key = jax.random.PRNGKey(0)
    k_x, k_w1, k_b1, k_w2 = jax.random.split(key, 4)

    # module hyper-params (small, consistent with IELM.__init__):
    N = 64            # batch (n_samples)
    INPUT_DIM = 32    # params.steps
    HIDDEN = 16       # params.hidden_size (columns grown during xfit)
    OUTPUT_DIM = 8    # params.H
    SIZE = 12         # active hidden units passed to forward()

    x = jax.random.normal(k_x, (N, INPUT_DIM), dtype=jnp.float32)
    # deterministic init mirroring initWeight / initBiases (normal, std=0.1)
    weight_IH = 0.1 * jax.random.normal(k_w1, (INPUT_DIM, HIDDEN), dtype=jnp.float32)
    bias_IH = 0.1 * jax.random.normal(k_b1, (1, HIDDEN), dtype=jnp.float32)
    weight_HO = 0.1 * jax.random.normal(k_w2, (HIDDEN, OUTPUT_DIM), dtype=jnp.float32)

    # Pad/cast parameters once; every forward() for any `size` reuses them and
    # the single compiled kernel (size is a prefetched scalar, not a shape).
    params = prepare_ielm_params(weight_IH, bias_IH, weight_HO)

    def ref_forward(size):
        h = jax.nn.sigmoid(x @ weight_IH[:, :size] + bias_IH[:, :size])
        return h @ weight_HO[:size, :]

    pred = jax.block_until_ready(ielm_forward_prepared(x, params, SIZE))
    assert pred.shape == (N, OUTPUT_DIM)
    assert jnp.allclose(pred, ref_forward(SIZE), atol=2e-2, rtol=2e-2), (
        float(jnp.max(jnp.abs(pred - ref_forward(SIZE)))))

    # A second `size` reuses the same compiled kernel (no re-pad / retrace).
    pred2 = jax.block_until_ready(ielm_forward_prepared(x, params, HIDDEN))
    assert jnp.allclose(pred2, ref_forward(HIDDEN), atol=2e-2, rtol=2e-2), (
        float(jnp.max(jnp.abs(pred2 - ref_forward(HIDDEN)))))

    print("KERNEL_OK")
</pallas_src>

<mosaic_0001>
module attributes {stable_mosaic.version = 11 : i64} {
  func.func @_ielm_kernel(%arg0: i32, %arg1: memref<1xi32, #tpu.memory_space<smem>>, %arg2: memref<64x32xf32, #tpu.memory_space<vmem>>, %arg3: memref<32x128xbf16, #tpu.memory_space<vmem>>, %arg4: memref<1x128xf32, #tpu.memory_space<vmem>>, %arg5: memref<128x128xbf16, #tpu.memory_space<vmem>>, %arg6: memref<64x128xf32, #tpu.memory_space<vmem>>) attributes {dimension_semantics = [#tpu.dimension_semantics<parallel>], iteration_bounds = array<i64: 1>, scalar_prefetch = 1 : i64, scratch_operands = 0 : i64, tpu.core_type = #tpu.core_type<tc>, window_params = [{transform_indices = @transform_0, window_bounds = array<i64: 64, 32>}, {pipeline_mode = #tpu.pipeline_mode<synchronous>, transform_indices = @transform_1, window_bounds = array<i64: 32, 128>}, {pipeline_mode = #tpu.pipeline_mode<synchronous>, transform_indices = @transform_2, window_bounds = array<i64: 1, 128>}, {pipeline_mode = #tpu.pipeline_mode<synchronous>, transform_indices = @transform_3, window_bounds = array<i64: 128, 128>}, {transform_indices = @transform_4, window_bounds = array<i64: 64, 128>}]} {
    %c0 = arith.constant 0 : index
    %c0_0 = arith.constant 0 : index
    %0 = vector.load %arg2[%c0, %c0_0] : memref<64x32xf32, #tpu.memory_space<vmem>>, vector<64x32xf32>
    %1 = arith.truncf %0 : vector<64x32xf32> to vector<64x32xbf16>
    %c0_1 = arith.constant 0 : index
    %c0_2 = arith.constant 0 : index
    %2 = vector.load %arg3[%c0_1, %c0_2] : memref<32x128xbf16, #tpu.memory_space<vmem>>, vector<32x128xbf16>
    %cst = arith.constant dense<0.000000e+00> : vector<64x128xf32>
    %3 = tpu.matmul %1, %2, %cst {dimension_numbers = #tpu.dot_dimension_numbers<[1], [0], [0], [1], [0, 0, 1, 1], [], []>} : vector<64x32xbf16>, vector<32x128xbf16>, vector<64x128xf32> -> vector<64x128xf32>
    %c0_3 = arith.constant 0 : index
    %c0_4 = arith.constant 0 : index
    %4 = vector.load %arg4[%c0_3, %c0_4] : memref<1x128xf32, #tpu.memory_space<vmem>>, vector<1x128xf32>
    %5 = vector.broadcast %4 : vector<1x128xf32> to vector<64x128xf32>
    %6 = arith.addf %3, %5 : vector<64x128xf32>
    %cst_5 = arith.constant 5.000000e-01 : f32
    %7 = vector.broadcast %cst_5 : f32 to vector<64x128xf32>
    %8 = arith.mulf %7, %6 : vector<64x128xf32>
    %9 = math.tanh %8 : vector<64x128xf32>
    %cst_6 = arith.constant 5.000000e-01 : f32
    %10 = vector.broadcast %cst_6 : f32 to vector<64x128xf32>
    %11 = arith.mulf %10, %9 : vector<64x128xf32>
    %cst_7 = arith.constant 5.000000e-01 : f32
    %12 = vector.broadcast %cst_7 : f32 to vector<64x128xf32>
    %13 = arith.addf %11, %12 : vector<64x128xf32>
    %14 = tpu.iota {dimensions = array<i32: 1>} : vector<64x128xi32>
    %c0_8 = arith.constant 0 : index
    %15 = memref.load %arg1[%c0_8] : memref<1xi32, #tpu.memory_space<smem>>
    %16 = vector.broadcast %15 : i32 to vector<64x128xi32>
    %17 = arith.cmpi slt, %14, %16 : vector<64x128xi32>
    %cst_9 = arith.constant 0.000000e+00 : f32
    %18 = vector.broadcast %cst_9 : f32 to vector<64x128xf32>
    %19 = arith.select %17, %13, %18 : vector<64x128xi1>, vector<64x128xf32>
    %20 = arith.truncf %19 : vector<64x128xf32> to vector<64x128xbf16>
    %c0_10 = arith.constant 0 : index
    %c0_11 = arith.constant 0 : index
    %21 = vector.load %arg5[%c0_10, %c0_11] : memref<128x128xbf16, #tpu.memory_space<vmem>>, vector<128x128xbf16>
    %cst_12 = arith.constant dense<0.000000e+00> : vector<64x128xf32>
    %22 = tpu.matmul %20, %21, %cst_12 {dimension_numbers = #tpu.dot_dimension_numbers<[1], [0], [0], [1], [0, 0, 1, 1], [], []>} : vector<64x128xbf16>, vector<128x128xbf16>, vector<64x128xf32> -> vector<64x128xf32>
    %c0_13 = arith.constant 0 : index
    %c0_14 = arith.constant 0 : index
    %23 = vector.load %arg6[%c0_13, %c0_14] : memref<64x128xf32, #tpu.memory_space<vmem>>, vector<64x128xf32>
    tpu.vector_store %arg6[%c0_13, %c0_14], %22 {strides = array<i32>} : memref<64x128xf32, #tpu.memory_space<vmem>>, vector<64x128xf32>,
    return
  }
  func.func @transform_0(%arg0: i32, %arg1: memref<1xi32, #tpu.memory_space<smem>>) -> (i32, i32) {
    %c0_i32 = arith.constant 0 : i32
    %c0_i32_0 = arith.constant 0 : i32
    return %arg0, %c0_i32 : i32, i32
  }
  func.func @transform_1(%arg0: i32, %arg1: memref<1xi32, #tpu.memory_space<smem>>) -> (i32, i32) {
    %c0_i32 = arith.constant 0 : i32
    %c0_i32_0 = arith.constant 0 : i32
    %c0_i32_1 = arith.constant 0 : i32
    return %c0_i32, %c0_i32_0 : i32, i32
  }
  func.func @transform_2(%arg0: i32, %arg1: memref<1xi32, #tpu.memory_space<smem>>) -> (i32, i32) {
    %c0_i32 = arith.constant 0 : i32
    %c0_i32_0 = arith.constant 0 : i32
    %c0_i32_1 = arith.constant 0 : i32
    return %c0_i32, %c0_i32_0 : i32, i32
  }
  func.func @transform_3(%arg0: i32, %arg1: memref<1xi32, #tpu.memory_space<smem>>) -> (i32, i32) {
    %c0_i32 = arith.constant 0 : i32
    %c0_i32_0 = arith.constant 0 : i32
    %c0_i32_1 = arith.constant 0 : i32
    return %c0_i32, %c0_i32_0 : i32, i32
  }
  func.func @transform_4(%arg0: i32, %arg1: memref<1xi32, #tpu.memory_space<smem>>) -> (i32, i32) {
    %c0_i32 = arith.constant 0 : i32
    %c0_i32_0 = arith.constant 0 : i32
    return %arg0, %c0_i32 : i32, i32
  }
}

module attributes {stable_mosaic.version = 11 : i64} {
  func.func @_ielm_kernel(%arg0: i32, %arg1: memref<1xi32, #tpu.memory_space<smem>>, %arg2: memref<64x32xf32, #tpu.memory_space<vmem>>, %arg3: memref<32x128xbf16, #tpu.memory_space<vmem>>, %arg4: memref<1x128xf32, #tpu.memory_space<vmem>>, %arg5: memref<128x128xbf16, #tpu.memory_space<vmem>>, %arg6: memref<64x128xf32, #tpu.memory_space<vmem>>) attributes {dimension_semantics = [#tpu.dimension_semantics<parallel>], iteration_bounds = array<i64: 1>, scalar_prefetch = 1 : i64, scratch_operands = 0 : i64, tpu.core_type = #tpu.core_type<tc>, window_params = [{transform_indices = @transform_0, window_bounds = array<i64: 64, 32>}, {pipeline_mode = #tpu.pipeline_mode<synchronous>, transform_indices = @transform_1, window_bounds = array<i64: 32, 128>}, {pipeline_mode = #tpu.pipeline_mode<synchronous>, transform_indices = @transform_2, window_bounds = array<i64: 1, 128>}, {pipeline_mode = #tpu.pipeline_mode<synchronous>, transform_indices = @transform_3, window_bounds = array<i64: 128, 128>}, {transform_indices = @transform_4, window_bounds = array<i64: 64, 128>}]} {
    %c0 = arith.constant 0 : index
    %c0_0 = arith.constant 0 : index
    %0 = vector.load %arg2[%c0, %c0_0] : memref<64x32xf32, #tpu.memory_space<vmem>>, vector<64x32xf32>
    %1 = arith.truncf %0 : vector<64x32xf32> to vector<64x32xbf16>
    %c0_1 = arith.constant 0 : index
    %c0_2 = arith.constant 0 : index
    %2 = vector.load %arg3[%c0_1, %c0_2] : memref<32x128xbf16, #tpu.memory_space<vmem>>, vector<32x128xbf16>
    %cst = arith.constant dense<0.000000e+00> : vector<64x128xf32>
    %3 = tpu.matmul %1, %2, %cst {dimension_numbers = #tpu.dot_dimension_numbers<[1], [0], [0], [1], [0, 0, 1, 1], [], []>} : vector<64x32xbf16>, vector<32x128xbf16>, vector<64x128xf32> -> vector<64x128xf32>
    %c0_3 = arith.constant 0 : index
    %c0_4 = arith.constant 0 : index
    %4 = vector.load %arg4[%c0_3, %c0_4] : memref<1x128xf32, #tpu.memory_space<vmem>>, vector<1x128xf32>
    %5 = vector.broadcast %4 : vector<1x128xf32> to vector<64x128xf32>
    %6 = arith.addf %3, %5 : vector<64x128xf32>
    %cst_5 = arith.constant 5.000000e-01 : f32
    %7 = vector.broadcast %cst_5 : f32 to vector<64x128xf32>
    %8 = arith.mulf %7, %6 : vector<64x128xf32>
    %9 = math.tanh %8 : vector<64x128xf32>
    %cst_6 = arith.constant 5.000000e-01 : f32
    %10 = vector.broadcast %cst_6 : f32 to vector<64x128xf32>
    %11 = arith.mulf %10, %9 : vector<64x128xf32>
    %cst_7 = arith.constant 5.000000e-01 : f32
    %12 = vector.broadcast %cst_7 : f32 to vector<64x128xf32>
    %13 = arith.addf %11, %12 : vector<64x128xf32>
    %14 = tpu.iota {dimensions = array<i32: 1>} : vector<64x128xi32>
    %c0_8 = arith.constant 0 : index
    %15 = memref.load %arg1[%c0_8] : memref<1xi32, #tpu.memory_space<smem>>
    %16 = vector.broadcast %15 : i32 to vector<64x128xi32>
    %17 = arith.cmpi slt, %14, %16 : vector<64x128xi32>
    %cst_9 = arith.constant 0.000000e+00 : f32
    %18 = vector.broadcast %cst_9 : f32 to vector<64x128xf32>
    %19 = arith.select %17, %13, %18 : vector<64x128xi1>, vector<64x128xf32>
    %20 = arith.truncf %19 : vector<64x128xf32> to vector<64x128xbf16>
    %c0_10 = arith.constant 0 : index
    %c0_11 = arith.constant 0 : index
    %21 = vector.load %arg5[%c0_10, %c0_11] : memref<128x128xbf16, #tpu.memory_space<vmem>>, vector<128x128xbf16>
    %cst_12 = arith.constant dense<0.000000e+00> : vector<64x128xf32>
    %22 = tpu.matmul %20, %21, %cst_12 {dimension_numbers = #tpu.dot_dimension_numbers<[1], [0], [0], [1], [0, 0, 1, 1], [], []>} : vector<64x128xbf16>, vector<128x128xbf16>, vector<64x128xf32> -> vector<64x128xf32>
    %c0_13 = arith.constant 0 : index
    %c0_14 = arith.constant 0 : index
    %23 = vector.load %arg6[%c0_13, %c0_14] : memref<64x128xf32, #tpu.memory_space<vmem>>, vector<64x128xf32>
    tpu.vector_store %arg6[%c0_13, %c0_14], %22 {strides = array<i32>} : memref<64x128xf32, #tpu.memory_space<vmem>>, vector<64x128xf32>,
    return
  }
  func.func @transform_0(%arg0: i32, %arg1: memref<1xi32, #tpu.memory_space<smem>>) -> (i32, i32) {
    %c0_i32 = arith.constant 0 : i32
    %c0_i32_0 = arith.constant 0 : i32
    return %arg0, %c0_i32 : i32, i32
  }
  func.func @transform_1(%arg0: i32, %arg1: memref<1xi32, #tpu.memory_space<smem>>) -> (i32, i32) {
    %c0_i32 = arith.constant 0 : i32
    %c0_i32_0 = arith.constant 0 : i32
    %c0_i32_1 = arith.constant 0 : i32
    return %c0_i32, %c0_i32_0 : i32, i32
  }
  func.func @transform_2(%arg0: i32, %arg1: memref<1xi32, #tpu.memory_space<smem>>) -> (i32, i32) {
    %c0_i32 = arith.constant 0 : i32
    %c0_i32_0 = arith.constant 0 : i32
    %c0_i32_1 = arith.constant 0 : i32
    return %c0_i32, %c0_i32_0 : i32, i32
  }
  func.func @transform_3(%arg0: i32, %arg1: memref<1xi32, #tpu.memory_space<smem>>) -> (i32, i32) {
    %c0_i32 = arith.constant 0 : i32
    %c0_i32_0 = arith.constant 0 : i32
    %c0_i32_1 = arith.constant 0 : i32
    return %c0_i32, %c0_i32_0 : i32, i32
  }
  func.func @transform_4(%arg0: i32, %arg1: memref<1xi32, #tpu.memory_space<smem>>) -> (i32, i32) {
    %c0_i32 = arith.constant 0 : i32
    %c0_i32_0 = arith.constant 0 : i32
    return %arg0, %c0_i32 : i32, i32
  }
}

</mosaic_0001>

<llo_original>
// kernel: fwd.1
$region0: #{fwd.1}
  #allocation0 [shape = 'u32[]', space=smem, size = 0x4, offset = 0x4, fixed_abs, tag = 'smem constant byte address 0x4 - core index']
  #allocation1 [shape = 'u32[72,128]{1,0:T(1,128)}', space=vmem, size = 0x9000, scoped, tag = 'internal scratch']
  #allocation2 [shape = 's32[1]{0}', space=sflag, size = 0x4, scoped, tag = 'scoped memory for fwd.1']
  #allocation3 [shape = 's32[1]{0:T(128)S(6)}', space=smem, size = 0x200, scoped, tag = 'prefetched SMEM operand 0']
  %s0 = inlined_call_operand.<no memory space> [shape: s32[1], index: 0, kind: input, shape index: {}]
  %s1 = inlined_call_operand.vmem [shape: f32[64,32], index: 1, kind: input, shape index: {}]
  %s2 = inlined_call_operand.vmem [shape: bf16[32,128], index: 2, kind: input, shape index: {}]
  %s3 = inlined_call_operand.vmem [shape: f32[1,128], index: 3, kind: input, shape index: {}]
  %s4 = inlined_call_operand.vmem [shape: bf16[128,128], index: 4, kind: input, shape index: {}]
  %s5 = inlined_call_operand.vmem [shape: f32[64,128], index: 5, kind: output, shape index: {}]
  %s6 = sld [smem:[#allocation0]]
  $region26: #{fwd.1} parent=0
    _
  %s8 = ssub.s32 1, %s6
  %s9 = scalar_select 0, %s8, %s6
  %10 = sst [smem:[#allocation3]] %s0
  // Predicated region
  $region2: #{fwd.1} parent=0 // pred_check
    _
  $region3: #{fwd.1} parent=0 // pred_check_branch
    %12 = sbr.rel (0) target = $region5
  $region4: #{fwd.1} parent=0 // pred_region
    _
  $region5: #{fwd.1} parent=0 // pred_fallthru
    _
  // Predicated region
  $region6: #{fwd.1} parent=0 // pred_check
    _
  $region7: #{fwd.1} parent=0 // pred_check_branch
    %14 = sbr.rel (0) target = $region9
  $region8: #{fwd.1} parent=0 // pred_region
    _
  $region9: #{fwd.1} parent=0 // pred_fallthru
    _
  // Predicated region
  $region10: #{fwd.1} parent=0 // pred_check
    _
  $region11: #{fwd.1} parent=0 // pred_check_branch
    %16 = sbr.rel (0) target = $region13
  $region12: #{fwd.1} parent=0 // pred_region
    _
  $region13: #{fwd.1} parent=0 // pred_fallthru
    _
  // Predicated region
  $region14: #{fwd.1} parent=0 // pred_check
    _
  $region15: #{fwd.1} parent=0 // pred_check_branch
    %18 = sbr.rel (0) target = $region17
  $region16: #{fwd.1} parent=0 // pred_region
    _
  $region17: #{fwd.1} parent=0 // pred_fallthru
    _
  %v20 = vld [vmem:[%s1] sm:$0xff]
  %v21 = vld [vmem:[%s1 + $0x8] sm:$0xff]
  %v22 = vld [vmem:[%s1 + $0x10] sm:$0xff]
  %v23 = vld [vmem:[%s1 + $0x18] sm:$0xff]
  %v24 = vld [vmem:[%s1 + $0x20] sm:$0xff]
  %v25 = vld [vmem:[%s1 + $0x28] sm:$0xff]
  %v26 = vld [vmem:[%s1 + $0x30] sm:$0xff]
  %v27 = vld [vmem:[%s1 + $0x38] sm:$0xff]
  %v28 = vpack.c.bf16 %v21, %v20
  %v29 = vpack.c.bf16 %v23, %v22
  %v30 = vpack.c.bf16 %v25, %v24
  %v31 = vpack.c.bf16 %v27, %v26
  %v32 = vld [vmem:[%s2] sm:$0xf]
  %v33 = vld [vmem:[%s2 + $0x4] sm:$0xf]
  %v34 = vld [vmem:[%s2 + $0x8] sm:$0xf]
  %v35 = vld [vmem:[%s2 + $0xc] sm:$0xf]
  %v36 = vld [vmem:[%s3] sm:$0x1]
  %v38 = vperm.slane %v36, 0
  %v44 = vunpack.c.l.b16 %v32
  %v45 = vunpack.c.l.b16 %v33
  %v46 = vunpack.c.l.b16 %v34
  %v47 = vunpack.c.l.b16 %v35
  %v48 = vpack.c.b16 %v45, %v44
  %v49 = vpack.c.b16 %v47, %v46
  %vm52 = vcmask 261120
  %v54 = vsel %vm52, %v28, 0
  %v57 = vsel %vm52, %v29, 0
  %v60 = vsel %vm52, %v30, 0
  %v63 = vsel %vm52, %v31, 0
  %65 = vmatpush.bf16.msra.mxu0 0
  %66 = vmatpush.bf16.msra.mxu0 0
  %67 = vmatpush.bf16.msra.mxu0 0
  %68 = vmatpush.bf16.msra.mxu0 0
  %69 = vmatpush.bf16.msra.mxu0 0
  %70 = vmatpush.bf16.msra.mxu0 0
  %71 = vmatpush.bf16.msra.mxu0 %v49
  %72 = vmatpush.bf16.msra.mxu0 %v48
  %73 = vmatmul.bf16.gmra.mxu0 %v54
  %v74 = vpop.f32.mrf.mxu0
  %v75 = vadd.f32 %v38, %v74
  %v76 = vpop.f32.mrf.mxu0
  %v77 = vadd.f32 %v38, %v76
  %78 = vmatmul.bf16.gmra.mxu0 %v57
  %v79 = vpop.f32.mrf.mxu0
  %v80 = vadd.f32 %v38, %v79
  %v81 = vpop.f32.mrf.mxu0
  %v82 = vadd.f32 %v38, %v81
  %83 = vmatmul.bf16.gmra.mxu0 %v60
  %v84 = vpop.f32.mrf.mxu0
  %v85 = vadd.f32 %v38, %v84
  %v86 = vpop.f32.mrf.mxu0
  %v87 = vadd.f32 %v38, %v86
  %88 = vmatmul.bf16.gmra.mxu0 %v63
  %v89 = vpop.f32.mrf.mxu0
  %v90 = vadd.f32 %v38, %v89
  %v91 = vpop.f32.mrf.mxu0
  %v92 = vadd.f32 %v38, %v91
  %93 = vdwg.mxu0
  %v94 = vmul.f32 %v75, 0.5
  %v95 = vmul.f32 %v77, 0.5
  %v96 = vmul.f32 %v80, 0.5
  %v97 = vmul.f32 %v82, 0.5
  %v98 = vmul.f32 %v85, 0.5
  %v99 = vmul.f32 %v87, 0.5
  %v100 = vmul.f32 %v90, 0.5
  %v101 = vmul.f32 %v92, 0.5
  %v102 = vtanh.pop %v94
  %v103 = vtanh.pop %v95
  %v104 = vtanh.pop %v96
  %v105 = vtanh.pop %v97
  %v106 = vtanh.pop %v98
  %v107 = vtanh.pop %v99
  %v108 = vtanh.pop %v100
  %v109 = vtanh.pop %v101
  %v110 = vmul.f32 %v102, 0.5
  %v111 = vmul.f32 %v103, 0.5
  %v112 = vmul.f32 %v104, 0.5
  %v113 = vmul.f32 %v105, 0.5
  %v114 = vmul.f32 %v106, 0.5
  %v115 = vmul.f32 %v107, 0.5
  %v116 = vmul.f32 %v108, 0.5
  %v117 = vmul.f32 %v109, 0.5
  %v118 = vadd.f32 %v110, 0.5
  %v119 = vadd.f32 %v111, 0.5
  %v120 = vadd.f32 %v112, 0.5
  %v121 = vadd.f32 %v113, 0.5
  %v122 = vadd.f32 %v114, 0.5
  %v123 = vadd.f32 %v115, 0.5
  %v124 = vadd.f32 %v116, 0.5
  %v125 = vadd.f32 %v117, 0.5
  %v126 = vlaneseq
  %v127 = vand.u32 %v126, 127
  %s128 = sld [smem:[#allocation3]]
  %v129 = vstv %s128
  %vm130 = vcmp.lt.s32.totalorder %v127, %v129
  %v131 = vsel %vm130, %v118, 0.0
  %v132 = vsel %vm130, %v119, 0.0
  %v133 = vsel %vm130, %v120, 0.0
  %v134 = vsel %vm130, %v121, 0.0
  %v135 = vsel %vm130, %v122, 0.0
  %v136 = vsel %vm130, %v123, 0.0
  %v137 = vsel %vm130, %v124, 0.0
  %v138 = vsel %vm130, %v125, 0.0
  %v139 = vpack.c.bf16 %v132, %v131
  %v140 = vpack.c.bf16 %v134, %v133
  %v141 = vpack.c.bf16 %v136, %v135
  %v142 = vpack.c.bf16 %v138, %v137
  %v143 = vld [vmem:[%s4] sm:$0xf]
  %v144 = vld [vmem:[%s4 + $0x4] sm:$0xf]
  %v145 = vld [vmem:[%s4 + $0x8] sm:$0xf]
  %v146 = vld [vmem:[%s4 + $0xc] sm:$0xf]
  %v147 = vld [vmem:[%s4 + $0x10] sm:$0xf]
  %v148 = vld [vmem:[%s4 + $0x14] sm:$0xf]
  %v149 = vld [vmem:[%s4 + $0x18] sm:$0xf]
  %v150 = vld [vmem:[%s4 + $0x1c] sm:$0xf]
  %v151 = vld [vmem:[%s4 + $0x20] sm:$0xf]
  %v152 = vld [vmem:[%s4 + $0x24] sm:$0xf]
  %v153 = vld [vmem:[%s4 + $0x28] sm:$0xf]
  %v154 = vld [vmem:[%s4 + $0x2c] sm:$0xf]
  %v155 = vld [vmem:[%s4 + $0x30] sm:$0xf]
  %v156 = vld [vmem:[%s4 + $0x34] sm:$0xf]
  %v157 = vld [vmem:[%s4 + $0x38] sm:$0xf]
  %v158 = vld [vmem:[%s4 + $0x3c] sm:$0xf]
  %v175 = vunpack.c.l.b16 %v143
  %v176 = vunpack.c.l.b16 %v144
  %v177 = vunpack.c.l.b16 %v145
  %v178 = vunpack.c.l.b16 %v146
  %v179 = vunpack.c.l.b16 %v147
  %v180 = vunpack.c.l.b16 %v148
  %v181 = vunpack.c.l.b16 %v149
  %v182 = vunpack.c.l.b16 %v150
  %v183 = vunpack.c.l.b16 %v151
  %v184 = vunpack.c.l.b16 %v152
  %v185 = vunpack.c.l.b16 %v153
  %v186 = vunpack.c.l.b16 %v154
  %v187 = vunpack.c.l.b16 %v155
  %v188 = vunpack.c.l.b16 %v156
  %v189 = vunpack.c.l.b16 %v157
  %v190 = vunpack.c.l.b16 %v158
  %v191 = vpack.c.b16 %v176, %v175
  %v192 = vpack.c.b16 %v178, %v177
  %v193 = vpack.c.b16 %v180, %v179
  %v194 = vpack.c.b16 %v182, %v181
  %v195 = vpack.c.b16 %v184, %v183
  %v196 = vpack.c.b16 %v186, %v185
  %v197 = vpack.c.b16 %v188, %v187
  %v198 = vpack.c.b16 %v190, %v189
  %207 = vmatpush.bf16.msra.mxu0 %v198
  %208 = vmatpush.bf16.msra.mxu0 %v197
  %209 = vmatpush.bf16.msra.mxu0 %v196
  %210 = vmatpush.bf16.msra.mxu0 %v195
  %211 = vmatpush.bf16.msra.mxu0 %v194
  %212 = vmatpush.bf16.msra.mxu0 %v193
  %213 = vmatpush.bf16.msra.mxu0 %v192
  %214 = vmatpush.bf16.msra.mxu0 %v191
  %215 = vmatmul.bf16.gmra.mxu0 %v139
  %v216 = vpop.f32.mrf.mxu0
  %v217 = vadd.f32 0.0, %v216
  %v218 = vpop.f32.mrf.mxu0
  %v219 = vadd.f32 0.0, %v218
  %220 = vmatmul.bf16.gmra.mxu0 %v140
  %v221 = vpop.f32.mrf.mxu0
  %v222 = vadd.f32 0.0, %v221
  %v223 = vpop.f32.mrf.mxu0
  %v224 = vadd.f32 0.0, %v223
  %225 = vmatmul.bf16.gmra.mxu0 %v141
  %v226 = vpop.f32.mrf.mxu0
  %v227 = vadd.f32 0.0, %v226
  %v228 = vpop.f32.mrf.mxu0
  %v229 = vadd.f32 0.0, %v228
  %230 = vmatmul.bf16.gmra.mxu0 %v142
  %v231 = vpop.f32.mrf.mxu0
  %v232 = vadd.f32 0.0, %v231
  %v233 = vpop.f32.mrf.mxu0
  %v234 = vadd.f32 0.0, %v233
  %235 = vdwg.mxu0
  %236 = vst [vmem:[%s5] sm:$0xff] %v217
  %237 = vst [vmem:[%s5 + $0x8] sm:$0xff] %v219
  %238 = vst [vmem:[%s5 + $0x10] sm:$0xff] %v222
  %239 = vst [vmem:[%s5 + $0x18] sm:$0xff] %v224
  %240 = vst [vmem:[%s5 + $0x20] sm:$0xff] %v227
  %241 = vst [vmem:[%s5 + $0x28] sm:$0xff] %v229
  %242 = vst [vmem:[%s5 + $0x30] sm:$0xff] %v232
  %243 = vst [vmem:[%s5 + $0x38] sm:$0xff] %v234
  // Predicated region
  $region18: #{fwd.1} parent=0 // pred_check
    _
  $region19: #{fwd.1} parent=0 // pred_check_branch
    %245 = sbr.rel (0) target = $region21
  $region20: #{fwd.1} parent=0 // pred_region
    _
  $region21: #{fwd.1} parent=0 // pred_fallthru
    _
  // Predicated region
  $region22: #{fwd.1} parent=0 // pred_check
    _
  $region23: #{fwd.1} parent=0 // pred_check_branch
    %247 = sbr.rel (0) target = $region25
  $region24: #{fwd.1} parent=0 // pred_region
    _
  $region25: #{fwd.1} parent=0 // pred_fallthru
    _

// kernel: fwd.1
$region0: #{fwd.1}
  #allocation0 [shape = 'u32[]', space=smem, size = 0x4, offset = 0x4, fixed_abs, tag = 'smem constant byte address 0x4 - core index']
  #allocation1 [shape = 'u32[72,128]{1,0:T(1,128)}', space=vmem, size = 0x9000, scoped, tag = 'internal scratch']
  #allocation2 [shape = 's32[1]{0}', space=sflag, size = 0x4, scoped, tag = 'scoped memory for fwd.1']
  #allocation3 [shape = 's32[1]{0:T(128)S(6)}', space=smem, size = 0x200, scoped, tag = 'prefetched SMEM operand 0']
  %s0 = inlined_call_operand.<no memory space> [shape: s32[1], index: 0, kind: input, shape index: {}]
  %s1 = inlined_call_operand.vmem [shape: f32[64,32], index: 1, kind: input, shape index: {}]
  %s2 = inlined_call_operand.vmem [shape: bf16[32,128], index: 2, kind: input, shape index: {}]
  %s3 = inlined_call_operand.vmem [shape: f32[1,128], index: 3, kind: input, shape index: {}]
  %s4 = inlined_call_operand.vmem [shape: bf16[128,128], index: 4, kind: input, shape index: {}]
  %s5 = inlined_call_operand.vmem [shape: f32[64,128], index: 5, kind: output, shape index: {}]
  %s6 = sld [smem:[#allocation0]]
  $region26: #{fwd.1} parent=0
    _
  %s8 = ssub.s32 1, %s6
  %s9 = scalar_select 0, %s8, %s6
  %10 = sst [smem:[#allocation3]] %s0
  // Predicated region
  $region2: #{fwd.1} parent=0 // pred_check
    _
  $region3: #{fwd.1} parent=0 // pred_check_branch
    %12 = sbr.rel (0) target = $region5
  $region4: #{fwd.1} parent=0 // pred_region
    _
  $region5: #{fwd.1} parent=0 // pred_fallthru
    _
  // Predicated region
  $region6: #{fwd.1} parent=0 // pred_check
    _
  $region7: #{fwd.1} parent=0 // pred_check_branch
    %14 = sbr.rel (0) target = $region9
  $region8: #{fwd.1} parent=0 // pred_region
    _
  $region9: #{fwd.1} parent=0 // pred_fallthru
    _
  // Predicated region
  $region10: #{fwd.1} parent=0 // pred_check
    _
  $region11: #{fwd.1} parent=0 // pred_check_branch
    %16 = sbr.rel (0) target = $region13
  $region12: #{fwd.1} parent=0 // pred_region
    _
  $region13: #{fwd.1} parent=0 // pred_fallthru
    _
  // Predicated region
  $region14: #{fwd.1} parent=0 // pred_check
    _
  $region15: #{fwd.1} parent=0 // pred_check_branch
    %18 = sbr.rel (0) target = $region17
  $region16: #{fwd.1} parent=0 // pred_region
    _
  $region17: #{fwd.1} parent=0 // pred_fallthru
    _
  %v20 = vld [vmem:[%s1] sm:$0xff]
  %v21 = vld [vmem:[%s1 + $0x8] sm:$0xff]
  %v22 = vld [vmem:[%s1 + $0x10] sm:$0xff]
  %v23 = vld [vmem:[%s1 + $0x18] sm:$0xff]
  %v24 = vld [vmem:[%s1 + $0x20] sm:$0xff]
  %v25 = vld [vmem:[%s1 + $0x28] sm:$0xff]
  %v26 = vld [vmem:[%s1 + $0x30] sm:$0xff]
  %v27 = vld [vmem:[%s1 + $0x38] sm:$0xff]
  %v28 = vpack.c.bf16 %v21, %v20
  %v29 = vpack.c.bf16 %v23, %v22
  %v30 = vpack.c.bf16 %v25, %v24
  %v31 = vpack.c.bf16 %v27, %v26
  %v32 = vld [vmem:[%s2] sm:$0xf]
  %v33 = vld [vmem:[%s2 + $0x4] sm:$0xf]
  %v34 = vld [vmem:[%s2 + $0x8] sm:$0xf]
  %v35 = vld [vmem:[%s2 + $0xc] sm:$0xf]
  %v36 = vld [vmem:[%s3] sm:$0x1]
  %v38 = vperm.slane %v36, 0
  %v44 = vunpack.c.l.b16 %v32
  %v45 = vunpack.c.l.b16 %v33
  %v46 = vunpack.c.l.b16 %v34
  %v47 = vunpack.c.l.b16 %v35
  %v48 = vpack.c.b16 %v45, %v44
  %v49 = vpack.c.b16 %v47, %v46
  %vm52 = vcmask 261120
  %v54 = vsel %vm52, %v28, 0
  %v57 = vsel %vm52, %v29, 0
  %v60 = vsel %vm52, %v30, 0
  %v63 = vsel %vm52, %v31, 0
  %65 = vmatpush.bf16.msra.mxu0 0
  %66 = vmatpush.bf16.msra.mxu0 0
  %67 = vmatpush.bf16.msra.mxu0 0
  %68 = vmatpush.bf16.msra.mxu0 0
  %69 = vmatpush.bf16.msra.mxu0 0
  %70 = vmatpush.bf16.msra.mxu0 0
  %71 = vmatpush.bf16.msra.mxu0 %v49
  %72 = vmatpush.bf16.msra.mxu0 %v48
  %73 = vmatmul.bf16.gmra.mxu0 %v54
  %v74 = vpop.f32.mrf.mxu0
  %v75 = vadd.f32 %v38, %v74
  %v76 = vpop.f32.mrf.mxu0
  %v77 = vadd.f32 %v38, %v76
  %78 = vmatmul.bf16.gmra.mxu0 %v57
  %v79 = vpop.f32.mrf.mxu0
  %v80 = vadd.f32 %v38, %v79
  %v81 = vpop.f32.mrf.mxu0
  %v82 = vadd.f32 %v38, %v81
  %83 = vmatmul.bf16.gmra.mxu0 %v60
  %v84 = vpop.f32.mrf.mxu0
  %v85 = vadd.f32 %v38, %v84
  %v86 = vpop.f32.mrf.mxu0
  %v87 = vadd.f32 %v38, %v86
  %88 = vmatmul.bf16.gmra.mxu0 %v63
  %v89 = vpop.f32.mrf.mxu0
  %v90 = vadd.f32 %v38, %v89
  %v91 = vpop.f32.mrf.mxu0
  %v92 = vadd.f32 %v38, %v91
  %93 = vdwg.mxu0
  %v94 = vmul.f32 %v75, 0.5
  %v95 = vmul.f32 %v77, 0.5
  %v96 = vmul.f32 %v80, 0.5
  %v97 = vmul.f32 %v82, 0.5
  %v98 = vmul.f32 %v85, 0.5
  %v99 = vmul.f32 %v87, 0.5
  %v100 = vmul.f32 %v90, 0.5
  %v101 = vmul.f32 %v92, 0.5
  %v102 = vtanh.pop %v94
  %v103 = vtanh.pop %v95
  %v104 = vtanh.pop %v96
  %v105 = vtanh.pop %v97
  %v106 = vtanh.pop %v98
  %v107 = vtanh.pop %v99
  %v108 = vtanh.pop %v100
  %v109 = vtanh.pop %v101
  %v110 = vmul.f32 %v102, 0.5
  %v111 = vmul.f32 %v103, 0.5
  %v112 = vmul.f32 %v104, 0.5
  %v113 = vmul.f32 %v105, 0.5
  %v114 = vmul.f32 %v106, 0.5
  %v115 = vmul.f32 %v107, 0.5
  %v116 = vmul.f32 %v108, 0.5
  %v117 = vmul.f32 %v109, 0.5
  %v118 = vadd.f32 %v110, 0.5
  %v119 = vadd.f32 %v111, 0.5
  %v120 = vadd.f32 %v112, 0.5
  %v121 = vadd.f32 %v113, 0.5
  %v122 = vadd.f32 %v114, 0.5
  %v123 = vadd.f32 %v115, 0.5
  %v124 = vadd.f32 %v116, 0.5
  %v125 = vadd.f32 %v117, 0.5
  %v126 = vlaneseq
  %v127 = vand.u32 %v126, 127
  %s128 = sld [smem:[#allocation3]]
  %v129 = vstv %s128
  %vm130 = vcmp.lt.s32.totalorder %v127, %v129
  %v131 = vsel %vm130, %v118, 0.0
  %v132 = vsel %vm130, %v119, 0.0
  %v133 = vsel %vm130, %v120, 0.0
  %v134 = vsel %vm130, %v121, 0.0
  %v135 = vsel %vm130, %v122, 0.0
  %v136 = vsel %vm130, %v123, 0.0
  %v137 = vsel %vm130, %v124, 0.0
  %v138 = vsel %vm130, %v125, 0.0
  %v139 = vpack.c.bf16 %v132, %v131
  %v140 = vpack.c.bf16 %v134, %v133
  %v141 = vpack.c.bf16 %v136, %v135
  %v142 = vpack.c.bf16 %v138, %v137
  %v143 = vld [vmem:[%s4] sm:$0xf]
  %v144 = vld [vmem:[%s4 + $0x4] sm:$0xf]
  %v145 = vld [vmem:[%s4 + $0x8] sm:$0xf]
  %v146 = vld [vmem:[%s4 + $0xc] sm:$0xf]
  %v147 = vld [vmem:[%s4 + $0x10] sm:$0xf]
  %v148 = vld [vmem:[%s4 + $0x14] sm:$0xf]
  %v149 = vld [vmem:[%s4 + $0x18] sm:$0xf]
  %v150 = vld [vmem:[%s4 + $0x1c] sm:$0xf]
  %v151 = vld [vmem:[%s4 + $0x20] sm:$0xf]
  %v152 = vld [vmem:[%s4 + $0x24] sm:$0xf]
  %v153 = vld [vmem:[%s4 + $0x28] sm:$0xf]
  %v154 = vld [vmem:[%s4 + $0x2c] sm:$0xf]
  %v155 = vld [vmem:[%s4 + $0x30] sm:$0xf]
  %v156 = vld [vmem:[%s4 + $0x34] sm:$0xf]
  %v157 = vld [vmem:[%s4 + $0x38] sm:$0xf]
  %v158 = vld [vmem:[%s4 + $0x3c] sm:$0xf]
  %v175 = vunpack.c.l.b16 %v143
  %v176 = vunpack.c.l.b16 %v144
  %v177 = vunpack.c.l.b16 %v145
  %v178 = vunpack.c.l.b16 %v146
  %v179 = vunpack.c.l.b16 %v147
  %v180 = vunpack.c.l.b16 %v148
  %v181 = vunpack.c.l.b16 %v149
  %v182 = vunpack.c.l.b16 %v150
  %v183 = vunpack.c.l.b16 %v151
  %v184 = vunpack.c.l.b16 %v152
  %v185 = vunpack.c.l.b16 %v153
  %v186 = vunpack.c.l.b16 %v154
  %v187 = vunpack.c.l.b16 %v155
  %v188 = vunpack.c.l.b16 %v156
  %v189 = vunpack.c.l.b16 %v157
  %v190 = vunpack.c.l.b16 %v158
  %v191 = vpack.c.b16 %v176, %v175
  %v192 = vpack.c.b16 %v178, %v177
  %v193 = vpack.c.b16 %v180, %v179
  %v194 = vpack.c.b16 %v182, %v181
  %v195 = vpack.c.b16 %v184, %v183
  %v196 = vpack.c.b16 %v186, %v185
  %v197 = vpack.c.b16 %v188, %v187
  %v198 = vpack.c.b16 %v190, %v189
  %207 = vmatpush.bf16.msra.mxu0 %v198
  %208 = vmatpush.bf16.msra.mxu0 %v197
  %209 = vmatpush.bf16.msra.mxu0 %v196
  %210 = vmatpush.bf16.msra.mxu0 %v195
  %211 = vmatpush.bf16.msra.mxu0 %v194
  %212 = vmatpush.bf16.msra.mxu0 %v193
  %213 = vmatpush.bf16.msra.mxu0 %v192
  %214 = vmatpush.bf16.msra.mxu0 %v191
  %215 = vmatmul.bf16.gmra.mxu0 %v139
  %v216 = vpop.f32.mrf.mxu0
  %v217 = vadd.f32 0.0, %v216
  %v218 = vpop.f32.mrf.mxu0
  %v219 = vadd.f32 0.0, %v218
  %220 = vmatmul.bf16.gmra.mxu0 %v140
  %v221 = vpop.f32.mrf.mxu0
  %v222 = vadd.f32 0.0, %v221
  %v223 = vpop.f32.mrf.mxu0
  %v224 = vadd.f32 0.0, %v223
  %225 = vmatmul.bf16.gmra.mxu0 %v141
  %v226 = vpop.f32.mrf.mxu0
  %v227 = vadd.f32 0.0, %v226
  %v228 = vpop.f32.mrf.mxu0
  %v229 = vadd.f32 0.0, %v228
  %230 = vmatmul.bf16.gmra.mxu0 %v142
  %v231 = vpop.f32.mrf.mxu0
  %v232 = vadd.f32 0.0, %v231
  %v233 = vpop.f32.mrf.mxu0
  %v234 = vadd.f32 0.0, %v233
  %235 = vdwg.mxu0
  %236 = vst [vmem:[%s5] sm:$0xff] %v217
  %237 = vst [vmem:[%s5 + $0x8] sm:$0xff] %v219
  %238 = vst [vmem:[%s5 + $0x10] sm:$0xff] %v222
  %239 = vst [vmem:[%s5 + $0x18] sm:$0xff] %v224
  %240 = vst [vmem:[%s5 + $0x20] sm:$0xff] %v227
  %241 = vst [vmem:[%s5 + $0x28] sm:$0xff] %v229
  %242 = vst [vmem:[%s5 + $0x30] sm:$0xff] %v232
  %243 = vst [vmem:[%s5 + $0x38] sm:$0xff] %v234
  // Predicated region
  $region18: #{fwd.1} parent=0 // pred_check
    _
  $region19: #{fwd.1} parent=0 // pred_check_branch
    %245 = sbr.rel (0) target = $region21
  $region20: #{fwd.1} parent=0 // pred_region
    _
  $region21: #{fwd.1} parent=0 // pred_fallthru
    _
  // Predicated region
  $region22: #{fwd.1} parent=0 // pred_check
    _
  $region23: #{fwd.1} parent=0 // pred_check_branch
    %247 = sbr.rel (0) target = $region25
  $region24: #{fwd.1} parent=0 // pred_region
    _
  $region25: #{fwd.1} parent=0 // pred_fallthru
    _

</llo_original>
